<compile_context>
chip_gen: v7x
topology: tpu7x:2x2x1
jax: 0.10.0
libtpu: 0.0.40
codegen_flags: <defaults>
</compile_context>

<pallas_src>
import math

import jax
import jax.numpy as jnp
from jax import lax
from jax.experimental import pallas as pl
from jax.experimental.pallas import tpu as pltpu

# bias of the "biased_softplus(1.0)" mapping used by NormalParamExtractor:
# softplus(x + b) with b = softplus^{-1}(1.0) = log(e - 1)
_SOFTPLUS_BIAS = math.log(math.e - 1.0)
_SCALE_LB = 1e-4
_MAX_TILE_B = 8192           # beyond this, per-step overhead is fully amortized
_MAX_SEPARATE_INPUTS = 4     # fold many narrow args into one input (VMEM pads f -> 128)


def _round_up(x, m):
    return ((x + m - 1) // m) * m


def _vmem_capacity_bytes():
    try:
        info = pltpu.get_tpu_info()
        return int(getattr(info, "vmem_capacity_bytes", 64 * 1024 * 1024))
    except Exception:
        return 64 * 1024 * 1024   # conservative fallback (v7x per-core figure)


def _choose_tile_b(B, feat_dims, in_itemsize, vmem_cap):
    """Budget-driven batch tile: biggest lane-dense tile that fits comfortably."""
    # VMEM bytes per batch row at steady state:
    #   each input block is (tile_b, f_i) padded to 128 lanes, double-buffered;
    #   the (2, tile_b) f32 output pads to 8 sublanes, double-buffered.
    per_row = sum(2 * _round_up(f, 128) * in_itemsize for f in feat_dims)
    per_row += 2 * 8 * 4
    budget = vmem_cap // 3                       # headroom for weights / compiler scratch
    tile = max(128, min(_MAX_TILE_B, budget // per_row))
    tile = (tile // 128) * 128                   # lane-dense output blocks
    # Keep the grid >= 2 on large B so the "parallel" axis can feed both v7x cores.
    tile = min(tile, max(128, _round_up(pl.cdiv(B, 2), 128)))
    if tile >= B:                                # single grid step: shrink to minimum
        tile = _round_up(B, 8)
    return tile


def _make_kernel(n_args):
    def kernel(*refs):
        x_refs = refs[:n_args]                   # each (tile_b, f_i), native dtype
        w_refs = refs[n_args:2 * n_args]         # each (2, f_i), resident
        b_ref = refs[2 * n_args]                 # (2, 1) f32, resident
        out_ref = refs[2 * n_args + 1]           # (2, tile_b) f32, lane-dense

        # Fused torch.cat + Linear, computed transposed: y^T = W @ x^T + b -> (2, tile_b)
        acc = None
        for x_ref, w_ref in zip(x_refs, w_refs):
            part = lax.dot_general(
                w_ref[...], x_ref[...],
                dimension_numbers=(((1,), (1,)), ((), ())),
                preferred_element_type=jnp.float32)
            acc = part if acc is None else acc + part
        y = acc + b_ref[...]                     # (2, tile_b) f32

        # Row 0 -> loc = sigmoid ; row 1 -> scale = biased_softplus(1.0), clamped.
        loc = jax.nn.sigmoid(y[0:1, :])
        z = y[1:2, :] + _SOFTPLUS_BIAS
        # numerically stable softplus: max(z, 0) + log1p(exp(-|z|))
        softplus = jnp.maximum(z, 0.0) + jnp.log1p(jnp.exp(-jnp.abs(z)))
        scale = jnp.maximum(softplus, _SCALE_LB)
        out_ref[...] = jnp.concatenate([loc, scale], axis=0)

    return kernel


def meta_policy_forward(args, weight, bias):
    """args: tuple of (B, f_i) arrays (native dtype, bf16 OK), sum(f_i) == n_states.
    weight: (2, n_states) in PyTorch nn.Linear layout; bias: (2,)/(1,2)/(2,1).
    Returns (loc, scale), each (B, 1) float32."""
    args = [jnp.asarray(a) for a in args]
    B = args[0].shape[0]

    # Many narrow args: each separate input pads its feature dim to a full 128-lane
    # VMEM tile, so fold them into a single concatenated input (one-time, bounded).
    if len(args) > _MAX_SEPARATE_INPUTS:
        args = [jnp.concatenate(args, axis=-1)]

    feat_dims = tuple(int(a.shape[-1]) for a in args)
    n_args = len(args)
    x_dtype = args[0].dtype
    itemsize = jnp.dtype(x_dtype).itemsize

    weight = jnp.asarray(weight)
    bias2 = jnp.asarray(bias, jnp.float32).reshape(2, 1)
    # Pre-split the weight per input arg -> free, resident (2, f_i) chunks in-kernel.
    w_chunks, off = [], 0
    for f in feat_dims:
        w_chunks.append(weight[:, off:off + f].astype(x_dtype))
        off += f

    vmem_cap = _vmem_capacity_bytes()
    tile_b = _choose_tile_b(B, feat_dims, itemsize, vmem_cap)
    grid_b = pl.cdiv(B, tile_b)
    b_ceil = grid_b * tile_b        # only the *output* is allocated padded; inputs are not

    # Steady-state footprint: double-buffered inputs + output, resident weights/bias.
    footprint = tile_b * (sum(2 * _round_up(f, 128) * itemsize for f in feat_dims)
                          + 2 * 8 * 4)
    footprint += sum(8 * _round_up(f, 128) * 4 for f in feat_dims) + 8 * 128 * 4
    vmem_limit = int(min(vmem_cap * 3 // 4, max(2 * footprint, 32 * 1024 * 1024)))

    in_specs = [pl.BlockSpec((tile_b, f), lambda i: (i, 0)) for f in feat_dims]
    in_specs += [pl.BlockSpec((2, f), lambda i: (0, 0)) for f in feat_dims]   # resident W
    in_specs.append(pl.BlockSpec((2, 1), lambda i: (0, 0)))                   # resident b
    out_spec = pl.BlockSpec((2, tile_b), lambda i: (0, i))                    # lane-dense

    out = pl.pallas_call(
        _make_kernel(n_args),
        out_shape=jax.ShapeDtypeStruct((2, b_ceil), jnp.float32),
        grid=(grid_b,),
        in_specs=in_specs,
        out_specs=out_spec,
        compiler_params=pltpu.CompilerParams(
            dimension_semantics=("parallel",),     # shards the batch axis across v7x TCs
            vmem_limit_bytes=vmem_limit,
        ),
    )(*args, *w_chunks, bias2)

    loc = out[0, :B].reshape(B, 1)
    scale = out[1, :B].reshape(B, 1)
    return loc, scale


def _reference(args, weight, bias):
    x = jnp.concatenate([jnp.asarray(a, jnp.float32) for a in args], axis=-1)
    y = x @ jnp.asarray(weight, jnp.float32).T + jnp.asarray(bias, jnp.float32).reshape(1, 2)
    loc = jax.nn.sigmoid(y[:, 0:1])
    scale = jnp.maximum(jax.nn.softplus(y[:, 1:2] + _SOFTPLUS_BIAS), _SCALE_LB)
    return loc, scale


if __name__ == "__main__":
    key = jax.random.PRNGKey(0)
    k1, k2, k3, k4, k5, k6 = jax.random.split(key, 6)

    f1, f2 = 16, 16
    n_states = f1 + f2        # hidden_units is accepted by __init__ but unused in forward

    # Deterministic Linear(n_states, 2) parameters (PyTorch-style uniform init).
    bound = 1.0 / math.sqrt(n_states)
    weight = jax.random.uniform(k3, (2, n_states), minval=-bound, maxval=bound,
                                dtype=jnp.float32)
    bias = jax.random.uniform(k4, (2,), minval=-bound, maxval=bound, dtype=jnp.float32)

    # Small case (single grid step), two input tensors concatenated like *args.
    batch = 8
    a = jax.random.normal(k1, (batch, f1), dtype=jnp.float32)
    b_in = jax.random.normal(k2, (batch, f2), dtype=jnp.float32)
    loc, scale = meta_policy_forward((a, b_in), weight, bias)
    jax.block_until_ready((loc, scale))
    ref_loc, ref_scale = _reference((a, b_in), weight, bias)
    assert loc.shape == (batch, 1) and scale.shape == (batch, 1)
    assert jnp.allclose(loc, ref_loc, atol=1e-5, rtol=1e-5)
    assert jnp.allclose(scale, ref_scale, atol=1e-5, rtol=1e-5)

    # Ragged batch exercising a multi-step grid with a Pallas partial edge block.
    batch2 = 300
    a2 = jax.random.normal(k5, (batch2, f1), dtype=jnp.float32)
    b2 = jax.random.normal(k6, (batch2, f2), dtype=jnp.float32)
    loc2, scale2 = meta_policy_forward((a2, b2), weight, bias)
    jax.block_until_ready((loc2, scale2))
    ref_loc2, ref_scale2 = _reference((a2, b2), weight, bias)
    assert loc2.shape == (batch2, 1) and scale2.shape == (batch2, 1)
    assert jnp.allclose(loc2, ref_loc2, atol=1e-5, rtol=1e-5)
    assert jnp.allclose(scale2, ref_scale2, atol=1e-5, rtol=1e-5)

    print("KERNEL_OK")
</pallas_src>

<mosaic_0001>
module attributes {stable_mosaic.version = 11 : i64} {
  func.func @kernel(%arg0: i32, %arg1: memref<8x16xf32, #tpu.memory_space<vmem>>, %arg2: memref<8x16xf32, #tpu.memory_space<vmem>>, %arg3: memref<2x16xf32, #tpu.memory_space<vmem>>, %arg4: memref<2x16xf32, #tpu.memory_space<vmem>>, %arg5: memref<2x1xf32, #tpu.memory_space<vmem>>, %arg6: memref<2x8xf32, #tpu.memory_space<vmem>>) attributes {dimension_semantics = [#tpu.dimension_semantics<parallel>], iteration_bounds = array<i64: 1>, scalar_prefetch = 0 : i64, scratch_operands = 0 : i64, tpu.core_type = #tpu.core_type<tc>, window_params = [{transform_indices = @transform_0, window_bounds = array<i64: 8, 16>}, {transform_indices = @transform_1, window_bounds = array<i64: 8, 16>}, {pipeline_mode = #tpu.pipeline_mode<synchronous>, transform_indices = @transform_2, window_bounds = array<i64: 2, 16>}, {pipeline_mode = #tpu.pipeline_mode<synchronous>, transform_indices = @transform_3, window_bounds = array<i64: 2, 16>}, {pipeline_mode = #tpu.pipeline_mode<synchronous>, transform_indices = @transform_4, window_bounds = array<i64: 2, 1>}, {transform_indices = @transform_5, window_bounds = array<i64: 2, 8>}]} {
    %c0 = arith.constant 0 : index
    %c0_0 = arith.constant 0 : index
    %0 = vector.load %arg3[%c0, %c0_0] : memref<2x16xf32, #tpu.memory_space<vmem>>, vector<2x16xf32>
    %c0_1 = arith.constant 0 : index
    %c0_2 = arith.constant 0 : index
    %1 = vector.load %arg1[%c0_1, %c0_2] : memref<8x16xf32, #tpu.memory_space<vmem>>, vector<8x16xf32>
    %cst = arith.constant dense<0.000000e+00> : vector<2x8xf32>
    %2 = tpu.matmul %0, %1, %cst {dimension_numbers = #tpu.dot_dimension_numbers<[1], [1], [0], [0], [0, 0, 1, 0], [], []>} : vector<2x16xf32>, vector<8x16xf32>, vector<2x8xf32> -> vector<2x8xf32>
    %c0_3 = arith.constant 0 : index
    %c0_4 = arith.constant 0 : index
    %3 = vector.load %arg4[%c0_3, %c0_4] : memref<2x16xf32, #tpu.memory_space<vmem>>, vector<2x16xf32>
    %c0_5 = arith.constant 0 : index
    %c0_6 = arith.constant 0 : index
    %4 = vector.load %arg2[%c0_5, %c0_6] : memref<8x16xf32, #tpu.memory_space<vmem>>, vector<8x16xf32>
    %cst_7 = arith.constant dense<0.000000e+00> : vector<2x8xf32>
    %5 = tpu.matmul %3, %4, %cst_7 {dimension_numbers = #tpu.dot_dimension_numbers<[1], [1], [0], [0], [0, 0, 1, 0], [], []>} : vector<2x16xf32>, vector<8x16xf32>, vector<2x8xf32> -> vector<2x8xf32>
    %6 = arith.addf %2, %5 : vector<2x8xf32>
    %c0_8 = arith.constant 0 : index
    %c0_9 = arith.constant 0 : index
    %7 = vector.load %arg5[%c0_8, %c0_9] : memref<2x1xf32, #tpu.memory_space<vmem>>, vector<2x1xf32>
    %8 = vector.broadcast %7 : vector<2x1xf32> to vector<2x8xf32>
    %9 = arith.addf %6, %8 : vector<2x8xf32>
    %10 = vector.extract_strided_slice %9 {offsets = [0, 0], sizes = [1, 8], strides = [1, 1]} : vector<2x8xf32> to vector<1x8xf32>
    %11 = arith.negf %10 : vector<1x8xf32>
    %12 = math.exp %11 : vector<1x8xf32>
    %cst_10 = arith.constant 1.000000e+00 : f32
    %13 = vector.broadcast %cst_10 : f32 to vector<1x8xf32>
    %14 = arith.addf %13, %12 : vector<1x8xf32>
    %15 = arith.divf %13, %14 : vector<1x8xf32>
    %16 = vector.extract_strided_slice %9 {offsets = [1, 0], sizes = [1, 8], strides = [1, 1]} : vector<2x8xf32> to vector<1x8xf32>
    %cst_11 = arith.constant 0.541324854 : f32
    %17 = vector.broadcast %cst_11 : f32 to vector<1x8xf32>
    %18 = arith.addf %16, %17 : vector<1x8xf32>
    %cst_12 = arith.constant 0.000000e+00 : f32
    %19 = vector.broadcast %cst_12 : f32 to vector<1x8xf32>
    %20 = arith.maximumf %18, %19 : vector<1x8xf32>
    %21 = math.absf %18 : vector<1x8xf32>
    %cst_13 = arith.constant 0.000000e+00 : f32
    %22 = vector.broadcast %cst_13 : f32 to vector<1x8xf32>
    %23 = arith.subf %22, %21 : vector<1x8xf32>
    %24 = math.exp %23 : vector<1x8xf32>
    %25 = math.log1p %24 : vector<1x8xf32>
    %26 = arith.addf %20, %25 : vector<1x8xf32>
    %cst_14 = arith.constant 9.99999974E-5 : f32
    %27 = vector.broadcast %cst_14 : f32 to vector<1x8xf32>
    %28 = arith.maximumf %26, %27 : vector<1x8xf32>
    %29 = tpu.concatenate %15, %28 in 0 : vector<1x8xf32>, vector<1x8xf32> -> vector<2x8xf32>
    %c0_15 = arith.constant 0 : index
    %c0_16 = arith.constant 0 : index
    %30 = vector.load %arg6[%c0_15, %c0_16] : memref<2x8xf32, #tpu.memory_space<vmem>>, vector<2x8xf32>
    tpu.vector_store %arg6[%c0_15, %c0_16], %29 {strides = array<i32>} : memref<2x8xf32, #tpu.memory_space<vmem>>, vector<2x8xf32>,
    return
  }
  func.func @transform_0(%arg0: i32) -> (i32, i32) {
    %c0_i32 = arith.constant 0 : i32
    %c0_i32_0 = arith.constant 0 : i32
    return %arg0, %c0_i32 : i32, i32
  }
  func.func @transform_1(%arg0: i32) -> (i32, i32) {
    %c0_i32 = arith.constant 0 : i32
    %c0_i32_0 = arith.constant 0 : i32
    return %arg0, %c0_i32 : i32, i32
  }
  func.func @transform_2(%arg0: i32) -> (i32, i32) {
    %c0_i32 = arith.constant 0 : i32
    %c0_i32_0 = arith.constant 0 : i32
    %c0_i32_1 = arith.constant 0 : i32
    return %c0_i32, %c0_i32_0 : i32, i32
  }
  func.func @transform_3(%arg0: i32) -> (i32, i32) {
    %c0_i32 = arith.constant 0 : i32
    %c0_i32_0 = arith.constant 0 : i32
    %c0_i32_1 = arith.constant 0 : i32
    return %c0_i32, %c0_i32_0 : i32, i32
  }
  func.func @transform_4(%arg0: i32) -> (i32, i32) {
    %c0_i32 = arith.constant 0 : i32
    %c0_i32_0 = arith.constant 0 : i32
    %c0_i32_1 = arith.constant 0 : i32
    return %c0_i32, %c0_i32_0 : i32, i32
  }
  func.func @transform_5(%arg0: i32) -> (i32, i32) {
    %c0_i32 = arith.constant 0 : i32
    %c0_i32_0 = arith.constant 0 : i32
    return %c0_i32, %arg0 : i32, i32
  }
}

</mosaic_0001>

<llo_original>
// kernel: tpu_custom_call.1
$region0: #{tpu_custom_call.1}
  #allocation0 [shape = 'u32[]', space=smem, size = 0x4, offset = 0x4, fixed_abs, tag = 'smem constant byte address 0x4 - core index']
  #allocation1 [shape = 'u32[144,128]{1,0:T(1,128)}', space=vmem, size = 0x12000, scoped, tag = 'internal scratch']
  %s0 = inlined_call_operand.hbm [shape: f32[8,16], index: 0, kind: input, shape index: {}]
  %s1 = inlined_call_operand.hbm [shape: f32[8,16], index: 1, kind: input, shape index: {}]
  %s2 = inlined_call_operand.vmem [shape: f32[2,16], index: 2, kind: input, shape index: {}]
  %s3 = inlined_call_operand.vmem [shape: f32[2,16], index: 3, kind: input, shape index: {}]
  %s4 = inlined_call_operand.vmem [shape: f32[2,1], index: 4, kind: input, shape index: {}]
  %s5 = inlined_call_operand.hbm [shape: f32[2,8], index: 5, kind: output, shape index: {}]
  %s6 = sld [smem:[#allocation0]]
  $region38: #{tpu_custom_call.1} parent=0
    _
  %s8 = ssub.s32 1, %s6
  %s9 = scalar_select 0, %s8, %s6
  $region1: #{tpu_custom_call.1} parent=0
    #allocation2 [shape = 'u8[4096]{0}', space=vmem, size = 0x1000, scoped, tag = 'input window, operand 0, single buffered']
    #allocation3 [shape = 's32[1]{0}', space=sflag, size = 0x4, scoped, tag = 'scoped memory for tpu_custom_call.1']
    #allocation4 [shape = 's32[1]{0}', space=sflag, size = 0x4, scoped, tag = 'scoped memory for tpu_custom_call.1']
    #allocation5 [shape = 'u8[4096]{0}', space=vmem, size = 0x1000, scoped, tag = 'input window, operand 1, single buffered']
    #allocation6 [shape = 's32[1]{0}', space=sflag, size = 0x4, scoped, tag = 'scoped memory for tpu_custom_call.1']
    #allocation7 [shape = 'u8[1024]{0}', space=vmem, size = 0x400, scoped, tag = 'output window, operand 0, single buffered']
    %10 = vsyncpa [#allocation3], 0
    %11 = vsyncpa [#allocation6], 0
    %12 = vsyncpa [#allocation4], 0
    // Predicated region
    $region2: #{tpu_custom_call.1} parent=1 // pred_check
      _
    $region3: #{tpu_custom_call.1} parent=1 // pred_check_branch
      %14 = sbr.rel (0) target = $region5
    $region4: #{tpu_custom_call.1} parent=1 // pred_region
      %s16 = ssub.s32 128, 128
      %17 = vsyncadd [#allocation3], %s16
      %s19 = sshll.u32 [#allocation2], 4
      %s20 = int_to_ptr.vmem [resolvable:$true] %s19
      %22 = dma.hbm_to_vmem [thread:$0]  %s0, 128, %s20, [#allocation3]
    $region5: #{tpu_custom_call.1} parent=1 // pred_fallthru
      _
    // Predicated region
    $region6: #{tpu_custom_call.1} parent=1 // pred_check
      _
    $region7: #{tpu_custom_call.1} parent=1 // pred_check_branch
      %24 = sbr.rel (0) target = $region9
    $region8: #{tpu_custom_call.1} parent=1 // pred_region
      %s26 = ssub.s32 128, 128
      %27 = vsyncadd [#allocation6], %s26
      %s29 = sshll.u32 [#allocation5], 4
      %s30 = int_to_ptr.vmem [resolvable:$true] %s29
      %32 = dma.hbm_to_vmem [thread:$0]  %s1, 128, %s30, [#allocation6]
    $region9: #{tpu_custom_call.1} parent=1 // pred_fallthru
      _
    // Predicated region
    $region10: #{tpu_custom_call.1} parent=1 // pred_check
      _
    $region11: #{tpu_custom_call.1} parent=1 // pred_check_branch
      %34 = sbr.rel (0) target = $region13
    $region12: #{tpu_custom_call.1} parent=1 // pred_region
      _
    $region13: #{tpu_custom_call.1} parent=1 // pred_fallthru
      _
    // Predicated region
    $region14: #{tpu_custom_call.1} parent=1 // pred_check
      _
    $region15: #{tpu_custom_call.1} parent=1 // pred_check_branch
      %36 = sbr.rel (0) target = $region17
    $region16: #{tpu_custom_call.1} parent=1 // pred_region
      _
    $region17: #{tpu_custom_call.1} parent=1 // pred_fallthru
      _
    // Predicated region
    $region18: #{tpu_custom_call.1} parent=1 // pred_check
      _
    $region19: #{tpu_custom_call.1} parent=1 // pred_check_branch
      %38 = sbr.rel (0) target = $region21
    $region20: #{tpu_custom_call.1} parent=1 // pred_region
      _
    $region21: #{tpu_custom_call.1} parent=1 // pred_fallthru
      _
    // Predicated region
    $region22: #{tpu_custom_call.1} parent=1 // pred_check
      _
    $region23: #{tpu_custom_call.1} parent=1 // pred_check_branch
      %40 = sbr.rel (0) target = $region25
    $region24: #{tpu_custom_call.1} parent=1 // pred_region
      %41 = dma.done [#allocation3], 128
    $region25: #{tpu_custom_call.1} parent=1 // pred_fallthru
      _
    // Predicated region
    $region26: #{tpu_custom_call.1} parent=1 // pred_check
      _
    $region27: #{tpu_custom_call.1} parent=1 // pred_check_branch
      %43 = sbr.rel (0) target = $region29
    $region28: #{tpu_custom_call.1} parent=1 // pred_region
      %44 = dma.done [#allocation6], 128
    $region29: #{tpu_custom_call.1} parent=1 // pred_fallthru
      _
    %v45 = vld [vmem:[%s2] sm:$0x3]
    %v46 = vld [vmem:[#allocation2] sm:$0xff]
    %v47 = vld [vmem:[%s3] sm:$0x3]
    %v48 = vld [vmem:[#allocation5] sm:$0xff]
    %vm49 = vcmask 130048
    %v51 = vsel %vm49, %v47, 0
    %v54 = vsel %vm49, %v48, 0
    %56 = vmatprep.subr.mxu0 0.0
    %57 = vmatpush1.xpose.msra.mxu0 %v54
    %58 = vmatprep.subr.mxu0 0.0
    %59 = vmatpush1.xpose.msra.mxu0 0.0
    %60 = vmatprep.subr.mxu0 0.0
    %61 = vmatpush1.xpose.msra.mxu0 0.0
    %62 = vmatprep.subr.mxu0 0.0
    %63 = vmatpush1.xpose.msra.mxu0 0.0
    %64 = vmatprep.subr.mxu0 0.0
    %65 = vmatpush1.xpose.msra.mxu0 0.0
    %66 = vmatprep.subr.mxu0 0.0
    %67 = vmatpush1.xpose.msra.mxu0 0.0
    %68 = vmatprep.subr.mxu0 0.0
    %69 = vmatpush1.xpose.msra.mxu0 0.0
    %70 = vmatprep.subr.mxu0 0.0
    %71 = vmatpush1.xpose.msra.mxu0 0.0
    %72 = vmatprep.subr.mxu0 0.0
    %73 = vmatpush1.xpose.msra.mxu0 0.0
    %74 = vmatprep.subr.mxu0 0.0
    %75 = vmatpush1.xpose.msra.mxu0 0.0
    %76 = vmatprep.subr.mxu0 0.0
    %77 = vmatpush1.xpose.msra.mxu0 0.0
    %78 = vmatprep.subr.mxu0 0.0
    %79 = vmatpush1.xpose.msra.mxu0 0.0
    %80 = vmatprep.subr.mxu0 0.0
    %81 = vmatpush1.xpose.msra.mxu0 0.0
    %82 = vmatprep.subr.mxu0 0.0
    %83 = vmatpush1.xpose.msra.mxu0 0.0
    %84 = vmatprep.subr.mxu0 0.0
    %85 = vmatpush1.xpose.msra.mxu0 0.0
    %86 = vmatprep.subr.mxu0 0.0
    %87 = vmatpush1.xpose.msra.mxu0 0.0
    %88 = vmatprep.subr.mxu0 0.0
    %89 = vmatpush1.xpose.msra.mxu0 0.0
    %90 = vmatprep.subr.mxu0 0.0
    %91 = vmatpush1.xpose.msra.mxu0 0.0
    %92 = vmatprep.subr.mxu0 0.0
    %93 = vmatpush1.xpose.msra.mxu0 0.0
    %94 = vmatprep.subr.mxu0 0.0
    %95 = vmatpush1.xpose.msra.mxu0 0.0
    %96 = vmatprep.subr.mxu0 0.0
    %97 = vmatpush1.xpose.msra.mxu0 0.0
    %98 = vmatprep.subr.mxu0 0.0
    %99 = vmatpush1.xpose.msra.mxu0 0.0
    %100 = vmatprep.subr.mxu0 0.0
    %101 = vmatpush1.xpose.msra.mxu0 0.0
    %102 = vmatprep.subr.mxu0 0.0
    %103 = vmatpush1.xpose.msra.mxu0 0.0
    %104 = vmatprep.subr.mxu0 0.0
    %105 = vmatpush1.xpose.msra.mxu0 0.0
    %106 = vmatprep.subr.mxu0 0.0
    %107 = vmatpush1.xpose.msra.mxu0 0.0
    %108 = vmatprep.subr.mxu0 0.0
    %109 = vmatpush1.xpose.msra.mxu0 0.0
    %110 = vmatprep.subr.mxu0 0.0
    %111 = vmatpush1.xpose.msra.mxu0 0.0
    %112 = vmatprep.subr.mxu0 0.0
    %113 = vmatpush1.xpose.msra.mxu0 0.0
    %114 = vmatprep.subr.mxu0 0.0
    %115 = vmatpush1.xpose.msra.mxu0 0.0
    %116 = vmatprep.subr.mxu0 0.0
    %117 = vmatpush1.xpose.msra.mxu0 0.0
    %118 = vmatprep.subr.mxu0 0.0
    %119 = vmatpush1.xpose.msra.mxu0 0.0
    %120 = vmatprep.mubr.f32.mxu0 0.0
    %121 = vmatmul.mubr.f32.gmra.mrb[0].mxu0 %v51
    %v122 = vpop.f32.mrb[0].mxu0
    %v123 = vadd.f32 0.0, %v122
    %v124 = vpop.f32.mrb[0].mxu0
    %125 = vdwg.mxu0
    %v127 = vsel %vm49, %v45, 0
    %v130 = vsel %vm49, %v46, 0
    %132 = vmatprep.subr.mxu0 0.0
    %133 = vmatpush1.xpose.msra.mxu0 %v130
    %134 = vmatprep.subr.mxu0 0.0
    %135 = vmatpush1.xpose.msra.mxu0 0.0
    %136 = vmatprep.subr.mxu0 0.0
    %137 = vmatpush1.xpose.msra.mxu0 0.0
    %138 = vmatprep.subr.mxu0 0.0
    %139 = vmatpush1.xpose.msra.mxu0 0.0
    %140 = vmatprep.subr.mxu0 0.0
    %141 = vmatpush1.xpose.msra.mxu0 0.0
    %142 = vmatprep.subr.mxu0 0.0
    %143 = vmatpush1.xpose.msra.mxu0 0.0
    %144 = vmatprep.subr.mxu0 0.0
    %145 = vmatpush1.xpose.msra.mxu0 0.0
    %146 = vmatprep.subr.mxu0 0.0
    %147 = vmatpush1.xpose.msra.mxu0 0.0
    %148 = vmatprep.subr.mxu0 0.0
    %149 = vmatpush1.xpose.msra.mxu0 0.0
    %150 = vmatprep.subr.mxu0 0.0
    %151 = vmatpush1.xpose.msra.mxu0 0.0
    %152 = vmatprep.subr.mxu0 0.0
    %153 = vmatpush1.xpose.msra.mxu0 0.0
    %154 = vmatprep.subr.mxu0 0.0
    %155 = vmatpush1.xpose.msra.mxu0 0.0
    %156 = vmatprep.subr.mxu0 0.0
    %157 = vmatpush1.xpose.msra.mxu0 0.0
    %158 = vmatprep.subr.mxu0 0.0
    %159 = vmatpush1.xpose.msra.mxu0 0.0
    %160 = vmatprep.subr.mxu0 0.0
    %161 = vmatpush1.xpose.msra.mxu0 0.0
    %162 = vmatprep.subr.mxu0 0.0
    %163 = vmatpush1.xpose.msra.mxu0 0.0
    %164 = vmatprep.subr.mxu0 0.0
    %165 = vmatpush1.xpose.msra.mxu0 0.0
    %166 = vmatprep.subr.mxu0 0.0
    %167 = vmatpush1.xpose.msra.mxu0 0.0
    %168 = vmatprep.subr.mxu0 0.0
    %169 = vmatpush1.xpose.msra.mxu0 0.0
    %170 = vmatprep.subr.mxu0 0.0
    %171 = vmatpush1.xpose.msra.mxu0 0.0
    %172 = vmatprep.subr.mxu0 0.0
    %173 = vmatpush1.xpose.msra.mxu0 0.0
    %174 = vmatprep.subr.mxu0 0.0
    %175 = vmatpush1.xpose.msra.mxu0 0.0
    %176 = vmatprep.subr.mxu0 0.0
    %177 = vmatpush1.xpose.msra.mxu0 0.0
    %178 = vmatprep.subr.mxu0 0.0
    %179 = vmatpush1.xpose.msra.mxu0 0.0
    %180 = vmatprep.subr.mxu0 0.0
    %181 = vmatpush1.xpose.msra.mxu0 0.0
    %182 = vmatprep.subr.mxu0 0.0
    %183 = vmatpush1.xpose.msra.mxu0 0.0
    %184 = vmatprep.subr.mxu0 0.0
    %185 = vmatpush1.xpose.msra.mxu0 0.0
    %186 = vmatprep.subr.mxu0 0.0
    %187 = vmatpush1.xpose.msra.mxu0 0.0
    %188 = vmatprep.subr.mxu0 0.0
    %189 = vmatpush1.xpose.msra.mxu0 0.0
    %190 = vmatprep.subr.mxu0 0.0
    %191 = vmatpush1.xpose.msra.mxu0 0.0
    %192 = vmatprep.subr.mxu0 0.0
    %193 = vmatpush1.xpose.msra.mxu0 0.0
    %194 = vmatprep.subr.mxu0 0.0
    %195 = vmatpush1.xpose.msra.mxu0 0.0
    %196 = vmatprep.mubr.f32.mxu0 0.0
    %197 = vmatmul.mubr.f32.gmra.mrb[0].mxu0 %v127
    %v198 = vpop.f32.mrb[0].mxu0
    %v199 = vadd.f32 %v123, %v198
    %v200 = vpop.f32.mrb[0].mxu0
    %201 = vdwg.mxu0
    %v202 = vld [vmem:[%s4] sm:$0x3]
    %204 = vset.pattern.permute.xlu0 0
    %205 = vperm.xlu0 %204, %v202
    %v206 = vpop.permute.xlu0 %205
    %v208 = vadd.f32 %v199, %v206
    %v209 = vxor.u32 %v208, 2147483648
    %v210 = vmul.f32 %v209, 1.442695
    %v211 = vpow.pop %v210
    %v212 = vadd.f32 %v211, 1.0
    %v213 = vrcp.pop %v212
    %v214 = vmul.f32 1.0, %v213
    %v215 = vadd.f32 %v208, 0.54132485
    %v216 = vmax.f32 %v215, 0.0
    %v217 = vand.u32 2147483647, %v215
    %v218 = vsub.f32 0.0, %v217
    %v219 = vmul.f32 %v218, 1.442695
    %v220 = vpow.pop %v219
    %v221 = vadd.f32 %v220, 1.0
    %v222 = vlog2.pop %v221
    %v223 = vmul.f32 %v222, 0.6931472
    %v224 = vmul.f32 -0.5, %v220
    %v225 = vadd.f32 %v224, 1.0
    %v226 = vmul.f32 %v225, %v220
    %v227 = vand.u32 2147483647, %v220
    %vm228 = vcmp.lt.f32.partialorder %v227, 0.0004427343
    %v229 = vsel %vm228, %v226, %v223
    %v230 = vadd.f32 %v216, %v229
    %v231 = vmax.f32 %v230, 0.0001
    %vm232 = vcmask 1040384
    %v233 = vsel %vm232, %v214, %v231
    %vm234 = vcmask 58368
    %235 = vst.msk [vmem:[#allocation7] sm:$0x3] %vm234, %v233
    // Predicated region
    $region30: #{tpu_custom_call.1} parent=1 // pred_check
      _
    $region31: #{tpu_custom_call.1} parent=1 // pred_check_branch
      %237 = sbr.rel (0) target = $region33
    $region32: #{tpu_custom_call.1} parent=1 // pred_region
      %s239 = ssub.s32 32, 32
      %240 = vsyncadd [#allocation4], %s239
      %s242 = sshll.u32 [#allocation7], 4
      %s243 = int_to_ptr.vmem [resolvable:$true] %s242
      %245 = dma.vmem_to_hbm [thread:$0]  %s243, 32, %s5, [#allocation4]
    $region33: #{tpu_custom_call.1} parent=1 // pred_fallthru
      _
    // Predicated region
    $region34: #{tpu_custom_call.1} parent=1 // pred_check
      _
    $region35: #{tpu_custom_call.1} parent=1 // pred_check_branch
      %247 = sbr.rel (0) target = $region37
    $region36: #{tpu_custom_call.1} parent=1 // pred_region
      %248 = dma.done [#allocation4], 32
    $region37: #{tpu_custom_call.1} parent=1 // pred_fallthru
      _
    %249 = vsyncpa [#allocation3], 1
    %250 = vsyncpa [#allocation6], 1
    %251 = vsyncpa [#allocation4], 1

</llo_original>
